<compile_context>
chip_gen: v6e
topology: v6e:2x2x1
jax: 0.10.0
libtpu: 0.0.40
codegen_flags: <defaults>
</compile_context>

<pallas_src>
import jax
import jax.numpy as jnp
from jax.experimental import pallas as pl
from jax.experimental.pallas import tpu as pltpu


def _round_up(x, m):
    return ((x + m - 1) // m) * m


def _pick_pack_factor(n_rows, encoder_dim):
    """How many encoder rows to pack per matmul row (free reshape only)."""
    if encoder_dim >= 128 or n_rows <= 0:
        return 1
    for g in (8, 4, 2):
        if n_rows % g == 0 and g * encoder_dim <= 512:
            return g
    return 1


def _choose_tile_rows(n_rows, row_bytes, *, target_bytes):
    """Rows (of the packed operand) per grid step."""
    if n_rows <= 16:
        return n_rows                                   # single tiny block
    rows_per_target = max(8, target_bytes // max(row_bytes, 1))
    # >= 2 steps and an even step count so both v7x TensorCores stay busy.
    n_steps = max(2, pl.cdiv(n_rows, rows_per_target))
    if n_steps % 2:
        n_steps += 1
    return min(n_rows, _round_up(pl.cdiv(n_rows, n_steps), 8))


def similarity2_kernel(enc_ref, w1_ref, bias_ref, w3_ref, b3_ref, out_ref):
    # x = tanh(enc_packed @ W1_blockdiag + fused_bias)      (MXU + VPU + EUP)
    x = jnp.tanh(
        jnp.dot(enc_ref[...], w1_ref[...], preferred_element_type=jnp.float32)
        + bias_ref[...]
    )
    # fc3 as a second (block-diagonal) matmul on the otherwise idle MXU;
    # the (tile, G) output block is lane-denser than a (tile, 1) column.
    out_ref[...] = (
        jnp.dot(x, w3_ref[...], preferred_element_type=jnp.float32) + b3_ref[...]
    ).astype(out_ref.dtype)


def similarity2(encoder_states, decoder_state, params,
                *, target_step_bytes=2 * 1024 * 1024):
    """encoder_states: [N, E] f32, decoder_state: [D] f32 -> [N, 1] f32."""
    w1, b1, w2, b2, w3, b3 = params
    N, E = encoder_states.shape
    I = w1.shape[1]

    # Decoder branch + both biases folded into one resident row (computed once).
    fused_bias = (decoder_state @ w2 + b2 + b1).astype(jnp.float32)   # (I,)

    # Lane-density packing (free, contiguous reshape) when N % G == 0.
    G = _pick_pack_factor(N, E)
    enc = encoder_states.astype(jnp.float32)
    if G > 1:
        enc = enc.reshape(N // G, G * E)
    n_rows, width = enc.shape

    eye_g = jnp.eye(G, dtype=jnp.float32)
    w1_eff = jnp.kron(eye_g, w1.astype(jnp.float32))                   # (G*E, G*I)
    w3_eff = jnp.kron(eye_g, w3.astype(jnp.float32).reshape(I, 1))     # (G*I, G)
    bias_eff = jnp.tile(fused_bias, G).reshape(1, G * I)               # (1, G*I)
    b3_eff = jnp.broadcast_to(b3.astype(jnp.float32).reshape(1, 1), (1, G))

    resident_bytes = 4 * (w1_eff.size + bias_eff.size + w3_eff.size + b3_eff.size)
    if resident_bytes > 12 * 1024 * 1024:
        # TODO(synk): contraction-axis grid + VMEM accumulator for huge W1.
        raise NotImplementedError("W1/W3 too large to keep VMEM-resident")

    tile_rows = _choose_tile_rows(n_rows, width * 4,
                                  target_bytes=target_step_bytes)
    grid = (pl.cdiv(n_rows, tile_rows),)        # unpadded: partial block masked

    step_bytes = 4 * tile_rows * (width + G)
    vmem_limit = int(min(64 * 1024 * 1024,
                         max(16 * 1024 * 1024,
                             2 * (2 * step_bytes + 2 * resident_bytes))))

    const2d = lambda i: (0, 0)
    out = pl.pallas_call(
        similarity2_kernel,
        out_shape=jax.ShapeDtypeStruct((n_rows, G), jnp.float32),
        grid=grid,
        in_specs=[
            pl.BlockSpec((tile_rows, width), lambda i: (i, 0)),  # encoder tiles (pipelined)
            pl.BlockSpec((width, G * I), const2d),               # block-diag W1 (resident)
            pl.BlockSpec((1, G * I), const2d),                   # fused bias (resident)
            pl.BlockSpec((G * I, G), const2d),                   # block-diag W3 (resident)
            pl.BlockSpec((1, G), const2d),                       # b3 row (resident)
        ],
        out_specs=pl.BlockSpec((tile_rows, G), lambda i: (i, 0)),
        compiler_params=pltpu.CompilerParams(
            dimension_semantics=("parallel",),
            vmem_limit_bytes=vmem_limit,
        ),
    )(enc, w1_eff, bias_eff, w3_eff, b3_eff)

    # (N//G, G) row-major holds scores in original row order; reshape is free.
    return out.reshape(N, 1)


def init_params(key, encoder_dim, decoder_dim, intermediate_dim):
    """Deterministic init mimicking nn.Linear (uniform +/- 1/sqrt(fan_in)).

    Weights stored transposed ([in_dim, out_dim]) for row-major matmuls."""
    ks = jax.random.split(key, 6)

    def lin(kw, kb, fan_in, fan_out):
        bound = 1.0 / jnp.sqrt(fan_in)
        w = jax.random.uniform(kw, (fan_in, fan_out), jnp.float32, -bound, bound)
        b = jax.random.uniform(kb, (fan_out,), jnp.float32, -bound, bound)
        return w, b

    w1, b1 = lin(ks[0], ks[1], encoder_dim, intermediate_dim)
    w2, b2 = lin(ks[2], ks[3], decoder_dim, intermediate_dim)
    w3, b3 = lin(ks[4], ks[5], intermediate_dim, 1)
    return (w1, b1, w2, b2, w3, b3)


def similarity2_ref(encoder_states, decoder_state, params):
    w1, b1, w2, b2, w3, b3 = params
    x1 = encoder_states @ w1 + b1
    x2 = decoder_state @ w2 + b2
    x = jnp.tanh(x1 + x2[None, :])
    return x @ w3 + b3


if __name__ == "__main__":
    key = jax.random.PRNGKey(0)
    k_enc, k_dec, k_par = jax.random.split(key, 3)

    encoder_dim, decoder_dim, intermediate_dim = 16, 32, 32
    decoder_state = jax.random.normal(k_dec, (decoder_dim,), jnp.float32)
    params = init_params(k_par, encoder_dim, decoder_dim, intermediate_dim)

    # N=8    : packed G=8, single tiny block
    # N=1300 : packed G=4, even 2-step grid with a partial (masked) last block
    # N=1301 : G=1 fallback, unpadded cdiv grid with a partial last block
    # N=4096 : packed G=8, even multi-step grid
    for n in (8, 1300, 1301, 4096):
        enc = jax.random.normal(jax.random.fold_in(k_enc, n),
                                (n, encoder_dim), jnp.float32)
        out = jax.block_until_ready(similarity2(enc, decoder_state, params))
        ref = similarity2_ref(enc, decoder_state, params)
        assert out.shape == (n, 1)
        assert jnp.allclose(out, ref, atol=1e-5, rtol=1e-5), f"mismatch at N={n}"

    print("KERNEL_OK")
</pallas_src>

<mosaic_0001>
module attributes {stable_mosaic.version = 11 : i64} {
  func.func @similarity2_kernel(%arg0: i32, %arg1: memref<1x128xf32, #tpu.memory_space<vmem>>, %arg2: memref<128x256xf32, #tpu.memory_space<vmem>>, %arg3: memref<1x256xf32, #tpu.memory_space<vmem>>, %arg4: memref<256x8xf32, #tpu.memory_space<vmem>>, %arg5: memref<1x8xf32, #tpu.memory_space<vmem>>, %arg6: memref<1x8xf32, #tpu.memory_space<vmem>>) attributes {dimension_semantics = [#tpu.dimension_semantics<parallel>], iteration_bounds = array<i64: 1>, scalar_prefetch = 0 : i64, scratch_operands = 0 : i64, tpu.core_type = #tpu.core_type<tc>, window_params = [{transform_indices = @transform_0, window_bounds = array<i64: 1, 128>}, {pipeline_mode = #tpu.pipeline_mode<synchronous>, transform_indices = @transform_1, window_bounds = array<i64: 128, 256>}, {pipeline_mode = #tpu.pipeline_mode<synchronous>, transform_indices = @transform_2, window_bounds = array<i64: 1, 256>}, {pipeline_mode = #tpu.pipeline_mode<synchronous>, transform_indices = @transform_3, window_bounds = array<i64: 256, 8>}, {pipeline_mode = #tpu.pipeline_mode<synchronous>, transform_indices = @transform_4, window_bounds = array<i64: 1, 8>}, {transform_indices = @transform_5, window_bounds = array<i64: 1, 8>}]} {
    %c0 = arith.constant 0 : index
    %c0_0 = arith.constant 0 : index
    %0 = vector.load %arg1[%c0, %c0_0] : memref<1x128xf32, #tpu.memory_space<vmem>>, vector<1x128xf32>
    %c0_1 = arith.constant 0 : index
    %c0_2 = arith.constant 0 : index
    %1 = vector.load %arg2[%c0_1, %c0_2] : memref<128x256xf32, #tpu.memory_space<vmem>>, vector<128x256xf32>
    %cst = arith.constant dense<0.000000e+00> : vector<1x256xf32>
    %2 = tpu.matmul %0, %1, %cst {dimension_numbers = #tpu.dot_dimension_numbers<[1], [0], [0], [1], [0, 0, 1, 1], [], []>} : vector<1x128xf32>, vector<128x256xf32>, vector<1x256xf32> -> vector<1x256xf32>
    %c0_3 = arith.constant 0 : index
    %c0_4 = arith.constant 0 : index
    %3 = vector.load %arg3[%c0_3, %c0_4] : memref<1x256xf32, #tpu.memory_space<vmem>>, vector<1x256xf32>
    %4 = arith.addf %2, %3 : vector<1x256xf32>
    %5 = math.tanh %4 : vector<1x256xf32>
    %c0_5 = arith.constant 0 : index
    %c0_6 = arith.constant 0 : index
    %6 = vector.load %arg4[%c0_5, %c0_6] : memref<256x8xf32, #tpu.memory_space<vmem>>, vector<256x8xf32>
    %cst_7 = arith.constant dense<0.000000e+00> : vector<1x8xf32>
    %7 = tpu.matmul %5, %6, %cst_7 {dimension_numbers = #tpu.dot_dimension_numbers<[1], [0], [0], [1], [0, 0, 1, 1], [], []>} : vector<1x256xf32>, vector<256x8xf32>, vector<1x8xf32> -> vector<1x8xf32>
    %c0_8 = arith.constant 0 : index
    %c0_9 = arith.constant 0 : index
    %8 = vector.load %arg5[%c0_8, %c0_9] : memref<1x8xf32, #tpu.memory_space<vmem>>, vector<1x8xf32>
    %9 = arith.addf %7, %8 : vector<1x8xf32>
    %c0_10 = arith.constant 0 : index
    %c0_11 = arith.constant 0 : index
    %10 = vector.load %arg6[%c0_10, %c0_11] : memref<1x8xf32, #tpu.memory_space<vmem>>, vector<1x8xf32>
    tpu.vector_store %arg6[%c0_10, %c0_11], %9 {strides = array<i32>} : memref<1x8xf32, #tpu.memory_space<vmem>>, vector<1x8xf32>,
    return
  }
  func.func @transform_0(%arg0: i32) -> (i32, i32) {
    %c0_i32 = arith.constant 0 : i32
    %c0_i32_0 = arith.constant 0 : i32
    return %arg0, %c0_i32 : i32, i32
  }
  func.func @transform_1(%arg0: i32) -> (i32, i32) {
    %c0_i32 = arith.constant 0 : i32
    %c0_i32_0 = arith.constant 0 : i32
    %c0_i32_1 = arith.constant 0 : i32
    return %c0_i32, %c0_i32_0 : i32, i32
  }
  func.func @transform_2(%arg0: i32) -> (i32, i32) {
    %c0_i32 = arith.constant 0 : i32
    %c0_i32_0 = arith.constant 0 : i32
    %c0_i32_1 = arith.constant 0 : i32
    return %c0_i32, %c0_i32_0 : i32, i32
  }
  func.func @transform_3(%arg0: i32) -> (i32, i32) {
    %c0_i32 = arith.constant 0 : i32
    %c0_i32_0 = arith.constant 0 : i32
    %c0_i32_1 = arith.constant 0 : i32
    return %c0_i32, %c0_i32_0 : i32, i32
  }
  func.func @transform_4(%arg0: i32) -> (i32, i32) {
    %c0_i32 = arith.constant 0 : i32
    %c0_i32_0 = arith.constant 0 : i32
    %c0_i32_1 = arith.constant 0 : i32
    return %c0_i32, %c0_i32_0 : i32, i32
  }
  func.func @transform_5(%arg0: i32) -> (i32, i32) {
    %c0_i32 = arith.constant 0 : i32
    %c0_i32_0 = arith.constant 0 : i32
    return %arg0, %c0_i32 : i32, i32
  }
}

</mosaic_0001>

<llo_original>
// kernel: tpu_custom_call.1
$region0: #{tpu_custom_call.1}
  #allocation0 [shape = 'u32[]', space=smem, size = 0x4, offset = 0x4, fixed_abs, tag = 'smem constant byte address 0x4 - core index']
  #allocation1 [shape = 'u32[144,128]{1,0:T(1,128)}', space=vmem, size = 0x12000, scoped, tag = 'internal scratch']
  %s0 = inlined_call_operand.vmem [shape: f32[1,128], index: 0, kind: input, shape index: {}]
  %s1 = inlined_call_operand.vmem [shape: f32[128,256], index: 1, kind: input, shape index: {}]
  %s2 = inlined_call_operand.vmem [shape: f32[1,256], index: 2, kind: input, shape index: {}]
  %s3 = inlined_call_operand.vmem [shape: f32[256,8], index: 3, kind: input, shape index: {}]
  %s4 = inlined_call_operand.vmem [shape: f32[1,8], index: 4, kind: input, shape index: {}]
  %s5 = inlined_call_operand.hbm [shape: f32[1,8], index: 5, kind: output, shape index: {}]
  %s6 = sld [smem:[#allocation0]]
  $region30: #{tpu_custom_call.1} parent=0
    _
  %s8 = ssub.s32 1, %s6
  %s9 = scalar_select 0, %s8, %s6
  $region1: #{tpu_custom_call.1} parent=0
    #allocation2 [shape = 'u8[512]{0}', space=vmem, size = 0x400, scoped, tag = 'output window, operand 0, single buffered']
    #allocation3 [shape = 's32[1]{0}', space=sflag, size = 0x4, scoped, tag = 'scoped memory for tpu_custom_call.1']
    %10 = vsyncpa [#allocation3], 0
    // Predicated region
    $region2: #{tpu_custom_call.1} parent=1 // pred_check
      _
    $region3: #{tpu_custom_call.1} parent=1 // pred_check_branch
      %12 = sbr.rel (0) target = $region5
    $region4: #{tpu_custom_call.1} parent=1 // pred_region
      _
    $region5: #{tpu_custom_call.1} parent=1 // pred_fallthru
      _
    // Predicated region
    $region6: #{tpu_custom_call.1} parent=1 // pred_check
      _
    $region7: #{tpu_custom_call.1} parent=1 // pred_check_branch
      %14 = sbr.rel (0) target = $region9
    $region8: #{tpu_custom_call.1} parent=1 // pred_region
      _
    $region9: #{tpu_custom_call.1} parent=1 // pred_fallthru
      _
    // Predicated region
    $region10: #{tpu_custom_call.1} parent=1 // pred_check
      _
    $region11: #{tpu_custom_call.1} parent=1 // pred_check_branch
      %16 = sbr.rel (0) target = $region13
    $region12: #{tpu_custom_call.1} parent=1 // pred_region
      _
    $region13: #{tpu_custom_call.1} parent=1 // pred_fallthru
      _
    // Predicated region
    $region14: #{tpu_custom_call.1} parent=1 // pred_check
      _
    $region15: #{tpu_custom_call.1} parent=1 // pred_check_branch
      %18 = sbr.rel (0) target = $region17
    $region16: #{tpu_custom_call.1} parent=1 // pred_region
      _
    $region17: #{tpu_custom_call.1} parent=1 // pred_fallthru
      _
    // Predicated region
    $region18: #{tpu_custom_call.1} parent=1 // pred_check
      _
    $region19: #{tpu_custom_call.1} parent=1 // pred_check_branch
      %20 = sbr.rel (0) target = $region21
    $region20: #{tpu_custom_call.1} parent=1 // pred_region
      _
    $region21: #{tpu_custom_call.1} parent=1 // pred_fallthru
      _
    %v21 = vld [vmem:[%s0] sm:$0x1]
    %v22 = vld [vmem:[%s1] sm:$0xff]
    %v23 = vld [vmem:[%s1 + $0x8] sm:$0xff]
    %v24 = vld [vmem:[%s1 + $0x10] sm:$0xff]
    %v25 = vld [vmem:[%s1 + $0x18] sm:$0xff]
    %v26 = vld [vmem:[%s1 + $0x20] sm:$0xff]
    %v27 = vld [vmem:[%s1 + $0x28] sm:$0xff]
    %v28 = vld [vmem:[%s1 + $0x30] sm:$0xff]
    %v29 = vld [vmem:[%s1 + $0x38] sm:$0xff]
    %v30 = vld [vmem:[%s1 + $0x40] sm:$0xff]
    %v31 = vld [vmem:[%s1 + $0x48] sm:$0xff]
    %v32 = vld [vmem:[%s1 + $0x50] sm:$0xff]
    %v33 = vld [vmem:[%s1 + $0x58] sm:$0xff]
    %v34 = vld [vmem:[%s1 + $0x60] sm:$0xff]
    %v35 = vld [vmem:[%s1 + $0x68] sm:$0xff]
    %v36 = vld [vmem:[%s1 + $0x70] sm:$0xff]
    %v37 = vld [vmem:[%s1 + $0x78] sm:$0xff]
    %v38 = vld [vmem:[%s1 + $0x80] sm:$0xff]
    %v39 = vld [vmem:[%s1 + $0x88] sm:$0xff]
    %v40 = vld [vmem:[%s1 + $0x90] sm:$0xff]
    %v41 = vld [vmem:[%s1 + $0x98] sm:$0xff]
    %v42 = vld [vmem:[%s1 + $0xa0] sm:$0xff]
    %v43 = vld [vmem:[%s1 + $0xa8] sm:$0xff]
    %v44 = vld [vmem:[%s1 + $0xb0] sm:$0xff]
    %v45 = vld [vmem:[%s1 + $0xb8] sm:$0xff]
    %v46 = vld [vmem:[%s1 + $0xc0] sm:$0xff]
    %v47 = vld [vmem:[%s1 + $0xc8] sm:$0xff]
    %v48 = vld [vmem:[%s1 + $0xd0] sm:$0xff]
    %v49 = vld [vmem:[%s1 + $0xd8] sm:$0xff]
    %v50 = vld [vmem:[%s1 + $0xe0] sm:$0xff]
    %v51 = vld [vmem:[%s1 + $0xe8] sm:$0xff]
    %v52 = vld [vmem:[%s1 + $0xf0] sm:$0xff]
    %v53 = vld [vmem:[%s1 + $0xf8] sm:$0xff]
    %v54 = vld [vmem:[%s2] sm:$0x3]
    %v56 = vlaneseq
    %v57 = vshrl.u32 %v56, 7
    %v58 = vsub.s32 0, %v57
    %v59 = vrot.slane %v54, %v58
    %v60 = vlaneseq
    %v61 = vshrl.u32 %v60, 7
    %v62 = vsub.s32 1, %v61
    %v63 = vrot.slane %v54, %v62
    %66 = vmatprep.subr.mxu0 %v53
    %67 = vmatpush1.msra.mxu0 %v52
    %68 = vmatprep.subr.mxu0 %v51
    %69 = vmatpush1.msra.mxu0 %v50
    %70 = vmatprep.subr.mxu0 %v49
    %71 = vmatpush1.msra.mxu0 %v48
    %72 = vmatprep.subr.mxu0 %v47
    %73 = vmatpush1.msra.mxu0 %v46
    %74 = vmatprep.subr.mxu0 %v45
    %75 = vmatpush1.msra.mxu0 %v44
    %76 = vmatprep.subr.mxu0 %v43
    %77 = vmatpush1.msra.mxu0 %v42
    %78 = vmatprep.subr.mxu0 %v41
    %79 = vmatpush1.msra.mxu0 %v40
    %80 = vmatprep.subr.mxu0 %v39
    %81 = vmatpush1.msra.mxu0 %v38
    %82 = vmatprep.subr.mxu0 %v37
    %83 = vmatpush1.msra.mxu0 %v36
    %84 = vmatprep.subr.mxu0 %v35
    %85 = vmatpush1.msra.mxu0 %v34
    %86 = vmatprep.subr.mxu0 %v33
    %87 = vmatpush1.msra.mxu0 %v32
    %88 = vmatprep.subr.mxu0 %v31
    %89 = vmatpush1.msra.mxu0 %v30
    %90 = vmatprep.subr.mxu0 %v29
    %91 = vmatpush1.msra.mxu0 %v28
    %92 = vmatprep.subr.mxu0 %v27
    %93 = vmatpush1.msra.mxu0 %v26
    %94 = vmatprep.subr.mxu0 %v25
    %95 = vmatpush1.msra.mxu0 %v24
    %96 = vmatprep.subr.mxu0 %v23
    %97 = vmatpush1.msra.mxu0 %v22
    %98 = vmatprep.subr.mxu0 0.0
    %99 = vmatpush2.msra.mxu0 0.0
    %100 = vmatprep.subr.mxu0 0.0
    %101 = vmatpush2.msra.mxu0 0.0
    %102 = vmatprep.subr.mxu0 0.0
    %103 = vmatpush2.msra.mxu0 0.0
    %104 = vmatprep.subr.mxu0 0.0
    %105 = vmatpush2.msra.mxu0 0.0
    %106 = vmatprep.subr.mxu0 0.0
    %107 = vmatpush2.msra.mxu0 0.0
    %108 = vmatprep.subr.mxu0 0.0
    %109 = vmatpush2.msra.mxu0 0.0
    %110 = vmatprep.subr.mxu0 0.0
    %111 = vmatpush2.msra.mxu0 0.0
    %112 = vmatprep.subr.mxu0 0.0
    %113 = vmatpush2.msra.mxu0 0.0
    %114 = vmatprep.subr.mxu0 0.0
    %115 = vmatpush2.msra.mxu0 0.0
    %116 = vmatprep.subr.mxu0 0.0
    %117 = vmatpush2.msra.mxu0 0.0
    %118 = vmatprep.subr.mxu0 0.0
    %119 = vmatpush2.msra.mxu0 0.0
    %120 = vmatprep.subr.mxu0 0.0
    %121 = vmatpush2.msra.mxu0 0.0
    %122 = vmatprep.subr.mxu0 0.0
    %123 = vmatpush2.msra.mxu0 0.0
    %124 = vmatprep.subr.mxu0 0.0
    %125 = vmatpush2.msra.mxu0 0.0
    %126 = vmatprep.subr.mxu0 0.0
    %127 = vmatpush2.msra.mxu0 0.0
    %128 = vmatprep.subr.mxu0 0.0
    %129 = vmatpush2.msra.mxu0 0.0
    %130 = vmatprep.mubr.f32.mxu0 0.0
    %131 = vmatmul.mubr.f32.gmra.mxu0 %v21
    %v132 = vpop.f32.mrf.mxu0
    %v133 = vadd.f32 %v59, %v132
    %v134 = vpop.f32.mrf.mxu0
    %v135 = vadd.f32 %v63, %v134
    %136 = vdwg.mxu0
    %v137 = vtanh.pop %v133
    %v138 = vtanh.pop %v135
    %v139 = vld [vmem:[%s3] sm:$0xff]
    %v140 = vld [vmem:[%s3 + $0x8] sm:$0xff]
    %v141 = vld [vmem:[%s3 + $0x10] sm:$0xff]
    %v142 = vld [vmem:[%s3 + $0x18] sm:$0xff]
    %v143 = vld [vmem:[%s3 + $0x20] sm:$0xff]
    %v144 = vld [vmem:[%s3 + $0x28] sm:$0xff]
    %v145 = vld [vmem:[%s3 + $0x30] sm:$0xff]
    %v146 = vld [vmem:[%s3 + $0x38] sm:$0xff]
    %v147 = vld [vmem:[%s3 + $0x40] sm:$0xff]
    %v148 = vld [vmem:[%s3 + $0x48] sm:$0xff]
    %v149 = vld [vmem:[%s3 + $0x50] sm:$0xff]
    %v150 = vld [vmem:[%s3 + $0x58] sm:$0xff]
    %v151 = vld [vmem:[%s3 + $0x60] sm:$0xff]
    %v152 = vld [vmem:[%s3 + $0x68] sm:$0xff]
    %v153 = vld [vmem:[%s3 + $0x70] sm:$0xff]
    %v154 = vld [vmem:[%s3 + $0x78] sm:$0xff]
    %v155 = vld [vmem:[%s3 + $0x80] sm:$0xff]
    %v156 = vld [vmem:[%s3 + $0x88] sm:$0xff]
    %v157 = vld [vmem:[%s3 + $0x90] sm:$0xff]
    %v158 = vld [vmem:[%s3 + $0x98] sm:$0xff]
    %v159 = vld [vmem:[%s3 + $0xa0] sm:$0xff]
    %v160 = vld [vmem:[%s3 + $0xa8] sm:$0xff]
    %v161 = vld [vmem:[%s3 + $0xb0] sm:$0xff]
    %v162 = vld [vmem:[%s3 + $0xb8] sm:$0xff]
    %v163 = vld [vmem:[%s3 + $0xc0] sm:$0xff]
    %v164 = vld [vmem:[%s3 + $0xc8] sm:$0xff]
    %v165 = vld [vmem:[%s3 + $0xd0] sm:$0xff]
    %v166 = vld [vmem:[%s3 + $0xd8] sm:$0xff]
    %v167 = vld [vmem:[%s3 + $0xe0] sm:$0xff]
    %v168 = vld [vmem:[%s3 + $0xe8] sm:$0xff]
    %v169 = vld [vmem:[%s3 + $0xf0] sm:$0xff]
    %v170 = vld [vmem:[%s3 + $0xf8] sm:$0xff]
    %v171 = vld [vmem:[%s4] sm:$0x1]
    %172 = vmatprep.subr.mxu0 0.0
    %173 = vmatpush1.msra.mxu0 %v154
    %174 = vmatprep.subr.mxu0 0.0
    %175 = vmatpush1.msra.mxu0 %v153
    %176 = vmatprep.subr.mxu0 0.0
    %177 = vmatpush1.msra.mxu0 %v152
    %178 = vmatprep.subr.mxu0 0.0
    %179 = vmatpush1.msra.mxu0 %v151
    %180 = vmatprep.subr.mxu0 0.0
    %181 = vmatpush1.msra.mxu0 %v150
    %182 = vmatprep.subr.mxu0 0.0
    %183 = vmatpush1.msra.mxu0 %v149
    %184 = vmatprep.subr.mxu0 0.0
    %185 = vmatpush1.msra.mxu0 %v148
    %186 = vmatprep.subr.mxu0 0.0
    %187 = vmatpush1.msra.mxu0 %v147
    %188 = vmatprep.subr.mxu0 0.0
    %189 = vmatpush1.msra.mxu0 %v146
    %190 = vmatprep.subr.mxu0 0.0
    %191 = vmatpush1.msra.mxu0 %v145
    %192 = vmatprep.subr.mxu0 0.0
    %193 = vmatpush1.msra.mxu0 %v144
    %194 = vmatprep.subr.mxu0 0.0
    %195 = vmatpush1.msra.mxu0 %v143
    %196 = vmatprep.subr.mxu0 0.0
    %197 = vmatpush1.msra.mxu0 %v142
    %198 = vmatprep.subr.mxu0 0.0
    %199 = vmatpush1.msra.mxu0 %v141
    %200 = vmatprep.subr.mxu0 0.0
    %201 = vmatpush1.msra.mxu0 %v140
    %202 = vmatprep.subr.mxu0 0.0
    %203 = vmatpush1.msra.mxu0 %v139
    %204 = vmatprep.subr.mxu0 0.0
    %205 = vmatpush2.msra.mxu0 %v170
    %206 = vmatprep.subr.mxu0 0.0
    %207 = vmatpush2.msra.mxu0 %v169
    %208 = vmatprep.subr.mxu0 0.0
    %209 = vmatpush2.msra.mxu0 %v168
    %210 = vmatprep.subr.mxu0 0.0
    %211 = vmatpush2.msra.mxu0 %v167
    %212 = vmatprep.subr.mxu0 0.0
    %213 = vmatpush2.msra.mxu0 %v166
    %214 = vmatprep.subr.mxu0 0.0
    %215 = vmatpush2.msra.mxu0 %v165
    %216 = vmatprep.subr.mxu0 0.0
    %217 = vmatpush2.msra.mxu0 %v164
    %218 = vmatprep.subr.mxu0 0.0
    %219 = vmatpush2.msra.mxu0 %v163
    %220 = vmatprep.subr.mxu0 0.0
    %221 = vmatpush2.msra.mxu0 %v162
    %222 = vmatprep.subr.mxu0 0.0
    %223 = vmatpush2.msra.mxu0 %v161
    %224 = vmatprep.subr.mxu0 0.0
    %225 = vmatpush2.msra.mxu0 %v160
    %226 = vmatprep.subr.mxu0 0.0
    %227 = vmatpush2.msra.mxu0 %v159
    %228 = vmatprep.subr.mxu0 0.0
    %229 = vmatpush2.msra.mxu0 %v158
    %230 = vmatprep.subr.mxu0 0.0
    %231 = vmatpush2.msra.mxu0 %v157
    %232 = vmatprep.subr.mxu0 0.0
    %233 = vmatpush2.msra.mxu0 %v156
    %234 = vmatprep.subr.mxu0 0.0
    %235 = vmatpush2.msra.mxu0 %v155
    %236 = vmatprep.mubr.f32.mxu0 %v138
    %237 = vmatmul.mubr.f32.gmra.mxu0 %v137
    %v238 = vpop.f32.mrf.mxu0
    %v239 = vadd.f32 %v171, %v238
    %v240 = vpop.f32.mrf.mxu0
    %241 = vdwg.mxu0
    %vm242 = vcmask 57344
    %243 = vst.msk [vmem:[#allocation2] sm:$0x1] %vm242, %v239
    // Predicated region
    $region22: #{tpu_custom_call.1} parent=1 // pred_check
      _
    $region23: #{tpu_custom_call.1} parent=1 // pred_check_branch
      %245 = sbr.rel (0) target = $region25
    $region24: #{tpu_custom_call.1} parent=1 // pred_region
      %s247 = ssub.s32 16, 16
      %248 = vsyncadd [#allocation3], %s247
      %s250 = sshll.u32 [#allocation2], 4
      %s251 = int_to_ptr.vmem [resolvable:$true] %s250
      %253 = dma.vmem_to_hbm [thread:$0]  %s251, 16, %s5, [#allocation3]
    $region25: #{tpu_custom_call.1} parent=1 // pred_fallthru
      _
    // Predicated region
    $region26: #{tpu_custom_call.1} parent=1 // pred_check
      _
    $region27: #{tpu_custom_call.1} parent=1 // pred_check_branch
      %255 = sbr.rel (0) target = $region29
    $region28: #{tpu_custom_call.1} parent=1 // pred_region
      %256 = dma.done [#allocation3], 16
    $region29: #{tpu_custom_call.1} parent=1 // pred_fallthru
      _
    %257 = vsyncpa [#allocation3], 1

</llo_original>
